<compile_context>
chip_gen: v7x
topology: tpu7x:2x2x1
jax: 0.10.0
libtpu: 0.0.40
codegen_flags: <defaults>
</compile_context>

<pallas_src>
import functools

import jax
import jax.numpy as jnp
from jax.experimental import pallas as pl
from jax.experimental.pallas import tpu as pltpu


def _round_up(n, m):
    return ((n + m - 1) // m) * m


def _mlp_kernel(x_ref, w1_ref, b1_ref, w2_ref, b2_ref, o_ref):
    # x_ref : (K, TM)        current batch tile, batch on the lane axis
    # w1_ref: (H_pad, K)     fc1 weight, transposed, hidden padded to 512
    # b1_ref: (H_pad, 1)     fc1 bias column (zero-padded)
    # w2_ref: (H_pad, 1)     fc2 weight column (zero-padded rows)
    # b2_ref: (1, 1) SMEM    fc2 bias scalar
    # o_ref : (1, TM)        lane-dense sigmoid outputs for this tile

    # fc1: dense MXU matmul, f32 accumulate.
    h = jnp.dot(w1_ref[...], x_ref[...],
                preferred_element_type=jnp.float32)          # (H_pad, TM)
    h = jnp.maximum(h + b1_ref[...], 0.0)                    # bias + ReLU
    # Dropout(0.5): identity in eval/inference mode.

    # fc2 (out_features = 1): VPU multiply + sublane reduction; keeps the MXU
    # free and produces a naturally lane-dense (1, TM) row.
    logit = jnp.sum(h * w2_ref[...], axis=0, keepdims=True)  # (1, TM)
    logit = logit + b2_ref[0, 0]

    # Sigmoid (exact form; exp rides the EUP slot).
    o_ref[...] = 1.0 / (1.0 + jnp.exp(-logit))


@functools.partial(jax.jit, static_argnames=("tm", "compute_dtype"))
def fully_connected_classify_net(x, w1, b1, w2, b2, *, tm=512,
                                 compute_dtype=jnp.float32):
    """x: (B, begin_len) f32; w1: (begin_len, 400); b1: (1, 400) or (400,);
    w2: (400, 1); b2: (1, 1) or scalar. Returns (B, 1) f32 probabilities."""
    B, K = x.shape
    H = w1.shape[1]
    H_pad = _round_up(H, 128)                  # 400 -> 512: lane-dense hidden

    # Batch tile: multiple of 128 lanes, capped at `tm`; pad B up to the grid.
    tm_eff = min(tm, _round_up(max(B, 1), 128))
    B_pad = _round_up(B, tm_eff)
    grid = (B_pad // tm_eff,)

    # Wrapper-side layout plumbing (zero padding is exact: ReLU(0)=0, 0*w2=0).
    w1_t = jnp.pad(w1, ((0, 0), (0, H_pad - H))).T            # (H_pad, K)
    b1_c = jnp.pad(b1.reshape(1, H), ((0, 0), (0, H_pad - H))).T  # (H_pad, 1)
    w2_c = jnp.pad(w2.reshape(H, 1), ((0, H_pad - H), (0, 0)))    # (H_pad, 1)
    b2_s = jnp.asarray(b2, jnp.float32).reshape(1, 1)             # (1, 1)
    x_t = jnp.pad(x, ((0, B_pad - B), (0, 0))).T                  # (K, B_pad)

    # Optional bf16 matmul inputs (f32 accumulate) for v6e/v7x MXU rate.
    x_t = x_t.astype(compute_dtype)
    w1_t = w1_t.astype(compute_dtype)

    out = pl.pallas_call(
        _mlp_kernel,
        out_shape=jax.ShapeDtypeStruct((1, B_pad), jnp.float32),
        grid=grid,
        in_specs=[
            # streamed / pipelined batch tiles
            pl.BlockSpec((K, tm_eff), lambda i: (0, i)),
            # grid-invariant (resident) parameters
            pl.BlockSpec((H_pad, K), lambda i: (0, 0)),
            pl.BlockSpec((H_pad, 1), lambda i: (0, 0)),
            pl.BlockSpec((H_pad, 1), lambda i: (0, 0)),
            # scalar fc2 bias in SMEM
            pl.BlockSpec(memory_space=pltpu.MemorySpace.SMEM),
        ],
        out_specs=pl.BlockSpec((1, tm_eff), lambda i: (0, i)),
        compiler_params=pltpu.CompilerParams(
            dimension_semantics=("parallel",),
            vmem_limit_bytes=32 * 1024 * 1024,
        ),
    )(x_t, w1_t, b1_c, w2_c, b2_s)

    return out[0, :B].reshape(B, 1)


def reference(x, w1, b1, w2, b2):
    h = jnp.maximum(x @ w1 + b1, 0.0)
    return jax.nn.sigmoid(h @ w2 + b2)


if __name__ == "__main__":
    # Small, module-consistent shapes: batch=8, begin_len=32, hidden=400
    # (fixed by the module), out=1.
    B, BEGIN_LEN, HIDDEN = 8, 32, 400

    key = jax.random.PRNGKey(0)
    kx, k1, kb1, k2, kb2 = jax.random.split(key, 5)

    x = jax.random.normal(kx, (B, BEGIN_LEN), dtype=jnp.float32)

    # Deterministic parameter init (PyTorch nn.Linear-style uniform bounds).
    bound1 = 1.0 / (BEGIN_LEN ** 0.5)
    w1 = jax.random.uniform(k1, (BEGIN_LEN, HIDDEN), jnp.float32, -bound1, bound1)
    b1 = jax.random.uniform(kb1, (1, HIDDEN), jnp.float32, -bound1, bound1)
    bound2 = 1.0 / (HIDDEN ** 0.5)
    w2 = jax.random.uniform(k2, (HIDDEN, 1), jnp.float32, -bound2, bound2)
    b2 = jax.random.uniform(kb2, (1, 1), jnp.float32, -bound2, bound2)

    out = fully_connected_classify_net(x, w1, b1, w2, b2)
    out = jax.block_until_ready(out)

    ref = reference(x, w1, b1, w2, b2)
    assert out.shape == (B, 1)
    assert jnp.allclose(out, ref, atol=1e-5, rtol=1e-5), "mismatch vs reference"

    print("KERNEL_OK")
</pallas_src>

<mosaic_0001>
module attributes {stable_mosaic.version = 11 : i64} {
  func.func @_mlp_kernel(%arg0: i32, %arg1: memref<32x128xf32, #tpu.memory_space<vmem>>, %arg2: memref<512x32xf32, #tpu.memory_space<vmem>>, %arg3: memref<512x1xf32, #tpu.memory_space<vmem>>, %arg4: memref<512x1xf32, #tpu.memory_space<vmem>>, %arg5: memref<1x1xf32, #tpu.memory_space<smem>>, %arg6: memref<1x128xf32, #tpu.memory_space<vmem>>) attributes {dimension_semantics = [#tpu.dimension_semantics<parallel>], iteration_bounds = array<i64: 1>, scalar_prefetch = 0 : i64, scratch_operands = 0 : i64, tpu.core_type = #tpu.core_type<tc>, window_params = [{transform_indices = @transform_0, window_bounds = array<i64: 32, 128>}, {pipeline_mode = #tpu.pipeline_mode<synchronous>, transform_indices = @transform_1, window_bounds = array<i64: 512, 32>}, {pipeline_mode = #tpu.pipeline_mode<synchronous>, transform_indices = @transform_2, window_bounds = array<i64: 512, 1>}, {pipeline_mode = #tpu.pipeline_mode<synchronous>, transform_indices = @transform_3, window_bounds = array<i64: 512, 1>}, {transform_indices = @transform_4, window_bounds = array<i64: 1, 1>}, {transform_indices = @transform_5, window_bounds = array<i64: 1, 128>}]} {
    %c0 = arith.constant 0 : index
    %c0_0 = arith.constant 0 : index
    %0 = vector.load %arg2[%c0, %c0_0] : memref<512x32xf32, #tpu.memory_space<vmem>>, vector<512x32xf32>
    %c0_1 = arith.constant 0 : index
    %c0_2 = arith.constant 0 : index
    %1 = vector.load %arg1[%c0_1, %c0_2] : memref<32x128xf32, #tpu.memory_space<vmem>>, vector<32x128xf32>
    %cst = arith.constant dense<0.000000e+00> : vector<512x128xf32>
    %2 = tpu.matmul %0, %1, %cst {dimension_numbers = #tpu.dot_dimension_numbers<[1], [0], [0], [1], [0, 0, 1, 1], [], []>} : vector<512x32xf32>, vector<32x128xf32>, vector<512x128xf32> -> vector<512x128xf32>
    %c0_3 = arith.constant 0 : index
    %c0_4 = arith.constant 0 : index
    %3 = vector.load %arg3[%c0_3, %c0_4] : memref<512x1xf32, #tpu.memory_space<vmem>>, vector<512x1xf32>
    %4 = vector.broadcast %3 : vector<512x1xf32> to vector<512x128xf32>
    %5 = arith.addf %2, %4 : vector<512x128xf32>
    %cst_5 = arith.constant 0.000000e+00 : f32
    %6 = vector.broadcast %cst_5 : f32 to vector<512x128xf32>
    %7 = arith.maximumf %5, %6 : vector<512x128xf32>
    %c0_6 = arith.constant 0 : index
    %c0_7 = arith.constant 0 : index
    %8 = vector.load %arg4[%c0_6, %c0_7] : memref<512x1xf32, #tpu.memory_space<vmem>>, vector<512x1xf32>
    %9 = vector.broadcast %8 : vector<512x1xf32> to vector<512x128xf32>
    %10 = arith.mulf %7, %9 : vector<512x128xf32>
    %cst_8 = arith.constant dense<0.000000e+00> : vector<128xf32>
    %11 = vector.multi_reduction <add>, %10, %cst_8 [0] : vector<512x128xf32> to vector<128xf32>
    %12 = vector.shape_cast %11 : vector<128xf32> to vector<1x128xf32>
    %c0_9 = arith.constant 0 : index
    %c0_10 = arith.constant 0 : index
    %13 = memref.load %arg5[%c0_9, %c0_10] : memref<1x1xf32, #tpu.memory_space<smem>>
    %14 = vector.broadcast %13 : f32 to vector<1x128xf32>
    %15 = arith.addf %12, %14 : vector<1x128xf32>
    %cst_11 = arith.constant 0.000000e+00 : f32
    %16 = vector.broadcast %cst_11 : f32 to vector<1x128xf32>
    %17 = arith.subf %16, %15 : vector<1x128xf32>
    %18 = math.exp %17 : vector<1x128xf32>
    %cst_12 = arith.constant 1.000000e+00 : f32
    %19 = vector.broadcast %cst_12 : f32 to vector<1x128xf32>
    %20 = arith.addf %19, %18 : vector<1x128xf32>
    %cst_13 = arith.constant 1.000000e+00 : f32
    %21 = vector.broadcast %cst_13 : f32 to vector<1x128xf32>
    %22 = arith.divf %21, %20 : vector<1x128xf32>
    %c0_14 = arith.constant 0 : index
    %c0_15 = arith.constant 0 : index
    %23 = vector.load %arg6[%c0_14, %c0_15] : memref<1x128xf32, #tpu.memory_space<vmem>>, vector<1x128xf32>
    tpu.vector_store %arg6[%c0_14, %c0_15], %22 {strides = array<i32>} : memref<1x128xf32, #tpu.memory_space<vmem>>, vector<1x128xf32>,
    return
  }
  func.func @transform_0(%arg0: i32) -> (i32, i32) {
    %c0_i32 = arith.constant 0 : i32
    %c0_i32_0 = arith.constant 0 : i32
    return %c0_i32, %arg0 : i32, i32
  }
  func.func @transform_1(%arg0: i32) -> (i32, i32) {
    %c0_i32 = arith.constant 0 : i32
    %c0_i32_0 = arith.constant 0 : i32
    %c0_i32_1 = arith.constant 0 : i32
    return %c0_i32, %c0_i32_0 : i32, i32
  }
  func.func @transform_2(%arg0: i32) -> (i32, i32) {
    %c0_i32 = arith.constant 0 : i32
    %c0_i32_0 = arith.constant 0 : i32
    %c0_i32_1 = arith.constant 0 : i32
    return %c0_i32, %c0_i32_0 : i32, i32
  }
  func.func @transform_3(%arg0: i32) -> (i32, i32) {
    %c0_i32 = arith.constant 0 : i32
    %c0_i32_0 = arith.constant 0 : i32
    %c0_i32_1 = arith.constant 0 : i32
    return %c0_i32, %c0_i32_0 : i32, i32
  }
  func.func @transform_4(%arg0: i32) -> (i32, i32) {
    %c0_i32 = arith.constant 0 : i32
    %c0_i32_0 = arith.constant 0 : i32
    %c0_i32_1 = arith.constant 0 : i32
    return %c0_i32, %c0_i32_0 : i32, i32
  }
  func.func @transform_5(%arg0: i32) -> (i32, i32) {
    %c0_i32 = arith.constant 0 : i32
    %c0_i32_0 = arith.constant 0 : i32
    return %c0_i32, %arg0 : i32, i32
  }
}

</mosaic_0001>

<llo_original>
// kernel: fully_connected_classify_net.1
$region0: #{fully_connected_classify_net.1}
  #allocation0 [shape = 'u32[]', space=smem, size = 0x4, offset = 0x4, fixed_abs, tag = 'smem constant byte address 0x4 - core index']
  #allocation1 [shape = 'u32[144,128]{1,0:T(1,128)}', space=vmem, size = 0x12000, scoped, tag = 'internal scratch']
  #allocation2 [shape = 'f32[1,1]{1,0:T(1,128)S(6)}', space=smem, size = 0x200, scoped, tag = 'scoped memory for fully_connected_classify_net.1']
  %s0 = inlined_call_operand.vmem [shape: f32[32,128], index: 0, kind: input, shape index: {}]
  %s1 = inlined_call_operand.vmem [shape: f32[512,32], index: 1, kind: input, shape index: {}]
  %s2 = inlined_call_operand.vmem [shape: f32[512,1], index: 2, kind: input, shape index: {}]
  %s3 = inlined_call_operand.vmem [shape: f32[512,1], index: 3, kind: input, shape index: {}]
  %s4 = inlined_call_operand.<no memory space> [shape: f32[1,1], index: 4, kind: input, shape index: {}]
  %s5 = inlined_call_operand.vmem [shape: f32[1,128], index: 5, kind: output, shape index: {}]
  %s6 = sld [smem:[#allocation0]]
  $region30: #{fully_connected_classify_net.1} parent=0
    _
  %s8 = ssub.s32 1, %s6
  %s9 = scalar_select 0, %s8, %s6
  %10 = sst [smem:[#allocation2]] %s4
  // Predicated region
  $region2: #{fully_connected_classify_net.1} parent=0 // pred_check
    _
  $region3: #{fully_connected_classify_net.1} parent=0 // pred_check_branch
    %12 = sbr.rel (0) target = $region5
  $region4: #{fully_connected_classify_net.1} parent=0 // pred_region
    _
  $region5: #{fully_connected_classify_net.1} parent=0 // pred_fallthru
    _
  // Predicated region
  $region6: #{fully_connected_classify_net.1} parent=0 // pred_check
    _
  $region7: #{fully_connected_classify_net.1} parent=0 // pred_check_branch
    %14 = sbr.rel (0) target = $region9
  $region8: #{fully_connected_classify_net.1} parent=0 // pred_region
    _
  $region9: #{fully_connected_classify_net.1} parent=0 // pred_fallthru
    _
  // Predicated region
  $region10: #{fully_connected_classify_net.1} parent=0 // pred_check
    _
  $region11: #{fully_connected_classify_net.1} parent=0 // pred_check_branch
    %16 = sbr.rel (0) target = $region13
  $region12: #{fully_connected_classify_net.1} parent=0 // pred_region
    _
  $region13: #{fully_connected_classify_net.1} parent=0 // pred_fallthru
    _
  // Predicated region
  $region14: #{fully_connected_classify_net.1} parent=0 // pred_check
    _
  $region15: #{fully_connected_classify_net.1} parent=0 // pred_check_branch
    %18 = sbr.rel (0) target = $region17
  $region16: #{fully_connected_classify_net.1} parent=0 // pred_region
    _
  $region17: #{fully_connected_classify_net.1} parent=0 // pred_fallthru
    _
  // Predicated region
  $region18: #{fully_connected_classify_net.1} parent=0 // pred_check
    _
  $region19: #{fully_connected_classify_net.1} parent=0 // pred_check_branch
    %20 = sbr.rel (0) target = $region21
  $region20: #{fully_connected_classify_net.1} parent=0 // pred_region
    _
  $region21: #{fully_connected_classify_net.1} parent=0 // pred_fallthru
    _
  %v21 = vld [vmem:[%s1] sm:$0xff]
  %v22 = vld [vmem:[%s1 + $0x8] sm:$0xff]
  %v23 = vld [vmem:[%s1 + $0x10] sm:$0xff]
  %v24 = vld [vmem:[%s1 + $0x18] sm:$0xff]
  %v25 = vld [vmem:[%s1 + $0x20] sm:$0xff]
  %v26 = vld [vmem:[%s1 + $0x28] sm:$0xff]
  %v27 = vld [vmem:[%s1 + $0x30] sm:$0xff]
  %v28 = vld [vmem:[%s1 + $0x38] sm:$0xff]
  %v29 = vld [vmem:[%s1 + $0x40] sm:$0xff]
  %v30 = vld [vmem:[%s1 + $0x48] sm:$0xff]
  %v31 = vld [vmem:[%s1 + $0x50] sm:$0xff]
  %v32 = vld [vmem:[%s1 + $0x58] sm:$0xff]
  %v33 = vld [vmem:[%s1 + $0x60] sm:$0xff]
  %v34 = vld [vmem:[%s1 + $0x68] sm:$0xff]
  %v35 = vld [vmem:[%s1 + $0x70] sm:$0xff]
  %v36 = vld [vmem:[%s1 + $0x78] sm:$0xff]
  %v37 = vld [vmem:[%s1 + $0x80] sm:$0xff]
  %v38 = vld [vmem:[%s1 + $0x88] sm:$0xff]
  %v39 = vld [vmem:[%s1 + $0x90] sm:$0xff]
  %v40 = vld [vmem:[%s1 + $0x98] sm:$0xff]
  %v41 = vld [vmem:[%s1 + $0xa0] sm:$0xff]
  %v42 = vld [vmem:[%s1 + $0xa8] sm:$0xff]
  %v43 = vld [vmem:[%s1 + $0xb0] sm:$0xff]
  %v44 = vld [vmem:[%s1 + $0xb8] sm:$0xff]
  %v45 = vld [vmem:[%s1 + $0xc0] sm:$0xff]
  %v46 = vld [vmem:[%s1 + $0xc8] sm:$0xff]
  %v47 = vld [vmem:[%s1 + $0xd0] sm:$0xff]
  %v48 = vld [vmem:[%s1 + $0xd8] sm:$0xff]
  %v49 = vld [vmem:[%s1 + $0xe0] sm:$0xff]
  %v50 = vld [vmem:[%s1 + $0xe8] sm:$0xff]
  %v51 = vld [vmem:[%s1 + $0xf0] sm:$0xff]
  %v52 = vld [vmem:[%s1 + $0xf8] sm:$0xff]
  %v53 = vld [vmem:[%s1 + $0x100] sm:$0xff]
  %v54 = vld [vmem:[%s1 + $0x108] sm:$0xff]
  %v55 = vld [vmem:[%s1 + $0x110] sm:$0xff]
  %v56 = vld [vmem:[%s1 + $0x118] sm:$0xff]
  %v57 = vld [vmem:[%s1 + $0x120] sm:$0xff]
  %v58 = vld [vmem:[%s1 + $0x128] sm:$0xff]
  %v59 = vld [vmem:[%s1 + $0x130] sm:$0xff]
  %v60 = vld [vmem:[%s1 + $0x138] sm:$0xff]
  %v61 = vld [vmem:[%s1 + $0x140] sm:$0xff]
  %v62 = vld [vmem:[%s1 + $0x148] sm:$0xff]
  %v63 = vld [vmem:[%s1 + $0x150] sm:$0xff]
  %v64 = vld [vmem:[%s1 + $0x158] sm:$0xff]
  %v65 = vld [vmem:[%s1 + $0x160] sm:$0xff]
  %v66 = vld [vmem:[%s1 + $0x168] sm:$0xff]
  %v67 = vld [vmem:[%s1 + $0x170] sm:$0xff]
  %v68 = vld [vmem:[%s1 + $0x178] sm:$0xff]
  %v69 = vld [vmem:[%s1 + $0x180] sm:$0xff]
  %v70 = vld [vmem:[%s1 + $0x188] sm:$0xff]
  %v71 = vld [vmem:[%s1 + $0x190] sm:$0xff]
  %v72 = vld [vmem:[%s1 + $0x198] sm:$0xff]
  %v73 = vld [vmem:[%s1 + $0x1a0] sm:$0xff]
  %v74 = vld [vmem:[%s1 + $0x1a8] sm:$0xff]
  %v75 = vld [vmem:[%s1 + $0x1b0] sm:$0xff]
  %v76 = vld [vmem:[%s1 + $0x1b8] sm:$0xff]
  %v77 = vld [vmem:[%s1 + $0x1c0] sm:$0xff]
  %v78 = vld [vmem:[%s1 + $0x1c8] sm:$0xff]
  %v79 = vld [vmem:[%s1 + $0x1d0] sm:$0xff]
  %v80 = vld [vmem:[%s1 + $0x1d8] sm:$0xff]
  %v81 = vld [vmem:[%s1 + $0x1e0] sm:$0xff]
  %v82 = vld [vmem:[%s1 + $0x1e8] sm:$0xff]
  %v83 = vld [vmem:[%s1 + $0x1f0] sm:$0xff]
  %v84 = vld [vmem:[%s1 + $0x1f8] sm:$0xff]
  %v85 = vld [vmem:[%s0] sm:$0xff]
  %v86 = vld [vmem:[%s0 + $0x8] sm:$0xff]
  %v87 = vld [vmem:[%s0 + $0x10] sm:$0xff]
  %v88 = vld [vmem:[%s0 + $0x18] sm:$0xff]
  %v89 = vld [vmem:[%s2] sm:$0xff]
  %v90 = vld [vmem:[%s2 + $0x8] sm:$0xff]
  %v91 = vld [vmem:[%s2 + $0x10] sm:$0xff]
  %v92 = vld [vmem:[%s2 + $0x18] sm:$0xff]
  %v93 = vld [vmem:[%s2 + $0x20] sm:$0xff]
  %v94 = vld [vmem:[%s2 + $0x28] sm:$0xff]
  %v95 = vld [vmem:[%s2 + $0x30] sm:$0xff]
  %v96 = vld [vmem:[%s2 + $0x38] sm:$0xff]
  %v97 = vld [vmem:[%s2 + $0x40] sm:$0xff]
  %v98 = vld [vmem:[%s2 + $0x48] sm:$0xff]
  %v99 = vld [vmem:[%s2 + $0x50] sm:$0xff]
  %v100 = vld [vmem:[%s2 + $0x58] sm:$0xff]
  %v101 = vld [vmem:[%s2 + $0x60] sm:$0xff]
  %v102 = vld [vmem:[%s2 + $0x68] sm:$0xff]
  %v103 = vld [vmem:[%s2 + $0x70] sm:$0xff]
  %v104 = vld [vmem:[%s2 + $0x78] sm:$0xff]
  %v105 = vld [vmem:[%s2 + $0x80] sm:$0xff]
  %v106 = vld [vmem:[%s2 + $0x88] sm:$0xff]
  %v107 = vld [vmem:[%s2 + $0x90] sm:$0xff]
  %v108 = vld [vmem:[%s2 + $0x98] sm:$0xff]
  %v109 = vld [vmem:[%s2 + $0xa0] sm:$0xff]
  %v110 = vld [vmem:[%s2 + $0xa8] sm:$0xff]
  %v111 = vld [vmem:[%s2 + $0xb0] sm:$0xff]
  %v112 = vld [vmem:[%s2 + $0xb8] sm:$0xff]
  %v113 = vld [vmem:[%s2 + $0xc0] sm:$0xff]
  %v114 = vld [vmem:[%s2 + $0xc8] sm:$0xff]
  %v115 = vld [vmem:[%s2 + $0xd0] sm:$0xff]
  %v116 = vld [vmem:[%s2 + $0xd8] sm:$0xff]
  %v117 = vld [vmem:[%s2 + $0xe0] sm:$0xff]
  %v118 = vld [vmem:[%s2 + $0xe8] sm:$0xff]
  %v119 = vld [vmem:[%s2 + $0xf0] sm:$0xff]
  %v120 = vld [vmem:[%s2 + $0xf8] sm:$0xff]
  %v121 = vld [vmem:[%s2 + $0x100] sm:$0xff]
  %v122 = vld [vmem:[%s2 + $0x108] sm:$0xff]
  %v123 = vld [vmem:[%s2 + $0x110] sm:$0xff]
  %v124 = vld [vmem:[%s2 + $0x118] sm:$0xff]
  %v125 = vld [vmem:[%s2 + $0x120] sm:$0xff]
  %v126 = vld [vmem:[%s2 + $0x128] sm:$0xff]
  %v127 = vld [vmem:[%s2 + $0x130] sm:$0xff]
  %v128 = vld [vmem:[%s2 + $0x138] sm:$0xff]
  %v129 = vld [vmem:[%s2 + $0x140] sm:$0xff]
  %v130 = vld [vmem:[%s2 + $0x148] sm:$0xff]
  %v131 = vld [vmem:[%s2 + $0x150] sm:$0xff]
  %v132 = vld [vmem:[%s2 + $0x158] sm:$0xff]
  %v133 = vld [vmem:[%s2 + $0x160] sm:$0xff]
  %v134 = vld [vmem:[%s2 + $0x168] sm:$0xff]
  %v135 = vld [vmem:[%s2 + $0x170] sm:$0xff]
  %v136 = vld [vmem:[%s2 + $0x178] sm:$0xff]
  %v137 = vld [vmem:[%s2 + $0x180] sm:$0xff]
  %v138 = vld [vmem:[%s2 + $0x188] sm:$0xff]
  %v139 = vld [vmem:[%s2 + $0x190] sm:$0xff]
  %v140 = vld [vmem:[%s2 + $0x198] sm:$0xff]
  %v141 = vld [vmem:[%s2 + $0x1a0] sm:$0xff]
  %v142 = vld [vmem:[%s2 + $0x1a8] sm:$0xff]
  %v143 = vld [vmem:[%s2 + $0x1b0] sm:$0xff]
  %v144 = vld [vmem:[%s2 + $0x1b8] sm:$0xff]
  %v145 = vld [vmem:[%s2 + $0x1c0] sm:$0xff]
  %v146 = vld [vmem:[%s2 + $0x1c8] sm:$0xff]
  %v147 = vld [vmem:[%s2 + $0x1d0] sm:$0xff]
  %v148 = vld [vmem:[%s2 + $0x1d8] sm:$0xff]
  %v149 = vld [vmem:[%s2 + $0x1e0] sm:$0xff]
  %v150 = vld [vmem:[%s2 + $0x1e8] sm:$0xff]
  %v151 = vld [vmem:[%s2 + $0x1f0] sm:$0xff]
  %v152 = vld [vmem:[%s2 + $0x1f8] sm:$0xff]
  %154 = vset.pattern.permute.xlu0 0
  %155 = vperm.xlu0 %154, %v89
  %v156 = vpop.permute.xlu0 %155
  %159 = vset.pattern.permute.xlu0 0
  %160 = vperm.xlu0 %159, %v90
  %v161 = vpop.permute.xlu0 %160
  %164 = vset.pattern.permute.xlu0 0
  %165 = vperm.xlu0 %164, %v91
  %v166 = vpop.permute.xlu0 %165
  %169 = vset.pattern.permute.xlu0 0
  %170 = vperm.xlu0 %169, %v92
  %v171 = vpop.permute.xlu0 %170
  %174 = vset.pattern.permute.xlu0 0
  %175 = vperm.xlu0 %174, %v93
  %v176 = vpop.permute.xlu0 %175
  %179 = vset.pattern.permute.xlu0 0
  %180 = vperm.xlu0 %179, %v94
  %v181 = vpop.permute.xlu0 %180
  %184 = vset.pattern.permute.xlu0 0
  %185 = vperm.xlu0 %184, %v95
  %v186 = vpop.permute.xlu0 %185
  %189 = vset.pattern.permute.xlu0 0
  %190 = vperm.xlu0 %189, %v96
  %v191 = vpop.permute.xlu0 %190
  %194 = vset.pattern.permute.xlu0 0
  %195 = vperm.xlu0 %194, %v97
  %v196 = vpop.permute.xlu0 %195
  %199 = vset.pattern.permute.xlu0 0
  %200 = vperm.xlu0 %199, %v98
  %v201 = vpop.permute.xlu0 %200
  %204 = vset.pattern.permute.xlu0 0
  %205 = vperm.xlu0 %204, %v99
  %v206 = vpop.permute.xlu0 %205
  %209 = vset.pattern.permute.xlu0 0
  %210 = vperm.xlu0 %209, %v100
  %v211 = vpop.permute.xlu0 %210
  %214 = vset.pattern.permute.xlu0 0
  %215 = vperm.xlu0 %214, %v101
  %v216 = vpop.permute.xlu0 %215
  %219 = vset.pattern.permute.xlu0 0
  %220 = vperm.xlu0 %219, %v102
  %v221 = vpop.permute.xlu0 %220
  %224 = vset.pattern.permute.xlu0 0
  %225 = vperm.xlu0 %224, %v103
  %v226 = vpop.permute.xlu0 %225
  %229 = vset.pattern.permute.xlu0 0
  %230 = vperm.xlu0 %229, %v104
  %v231 = vpop.permute.xlu0 %230
  %234 = vset.pattern.permute.xlu0 0
  %235 = vperm.xlu0 %234, %v105
  %v236 = vpop.permute.xlu0 %235
  %239 = vset.pattern.permute.xlu0 0
  %240 = vperm.xlu0 %239, %v106
  %v241 = vpop.permute.xlu0 %240
  %244 = vset.pattern.permute.xlu0 0
  %245 = vperm.xlu0 %244, %v107
  %v246 = vpop.permute.xlu0 %245
  %249 = vset.pattern.permute.xlu0 0
  %250 = vperm.xlu0 %249, %v108
  %v251 = vpop.permute.xlu0 %250
  %254 = vset.pattern.permute.xlu0 0
  %255 = vperm.xlu0 %254, %v109
  %v256 = vpop.permute.xlu0 %255
  %259 = vset.pattern.permute.xlu0 0
  %260 = vperm.xlu0 %259, %v110
  %v261 = vpop.permute.xlu0 %260
  %264 = vset.pattern.permute.xlu0 0
  %265 = vperm.xlu0 %264, %v111
  %v266 = vpop.permute.xlu0 %265
  %269 = vset.pattern.permute.xlu0 0
  %270 = vperm.xlu0 %269, %v112
  %v271 = vpop.permute.xlu0 %270
  %274 = vset.pattern.permute.xlu0 0
  %275 = vperm.xlu0 %274, %v113
  %v276 = vpop.permute.xlu0 %275
  %279 = vset.pattern.permute.xlu0 0
  %280 = vperm.xlu0 %279, %v114
  %v281 = vpop.permute.xlu0 %280
  %284 = vset.pattern.permute.xlu0 0
  %285 = vperm.xlu0 %284, %v115
  %v286 = vpop.permute.xlu0 %285
  %289 = vset.pattern.permute.xlu0 0
  %290 = vperm.xlu0 %289, %v116
  %v291 = vpop.permute.xlu0 %290
  %294 = vset.pattern.permute.xlu0 0
  %295 = vperm.xlu0 %294, %v117
  %v296 = vpop.permute.xlu0 %295
  %299 = vset.pattern.permute.xlu0 0
  %300 = vperm.xlu0 %299, %v118
  %v301 = vpop.permute.xlu0 %300
  %304 = vset.pattern.permute.xlu0 0
  %305 = vperm.xlu0 %304, %v119
  %v306 = vpop.permute.xlu0 %305
  %309 = vset.pattern.permute.xlu0 0
  %310 = vperm.xlu0 %309, %v120
  %v311 = vpop.permute.xlu0 %310
  %314 = vset.pattern.permute.xlu0 0
  %315 = vperm.xlu0 %314, %v121
  %v316 = vpop.permute.xlu0 %315
  %319 = vset.pattern.permute.xlu0 0
  %320 = vperm.xlu0 %319, %v122
  %v321 = vpop.permute.xlu0 %320
  %324 = vset.pattern.permute.xlu0 0
  %325 = vperm.xlu0 %324, %v123
  %v326 = vpop.permute.xlu0 %325
  %329 = vset.pattern.permute.xlu0 0
  %330 = vperm.xlu0 %329, %v124
  %v331 = vpop.permute.xlu0 %330
  %334 = vset.pattern.permute.xlu0 0
  %335 = vperm.xlu0 %334, %v125
  %v336 = vpop.permute.xlu0 %335
  %339 = vset.pattern.permute.xlu0 0
  %340 = vperm.xlu0 %339, %v126
  %v341 = vpop.permute.xlu0 %340
  %344 = vset.pattern.permute.xlu0 0
  %345 = vperm.xlu0 %344, %v127
  %v346 = vpop.permute.xlu0 %345
  %349 = vset.pattern.permute.xlu0 0
  %350 = vperm.xlu0 %349, %v128
  %v351 = vpop.permute.xlu0 %350
  %354 = vset.pattern.permute.xlu0 0
  %355 = vperm.xlu0 %354, %v129
  %v356 = vpop.permute.xlu0 %355
  %359 = vset.pattern.permute.xlu0 0
  %360 = vperm.xlu0 %359, %v130
  %v361 = vpop.permute.xlu0 %360
  %364 = vset.pattern.permute.xlu0 0
  %365 = vperm.xlu0 %364, %v131
  %v366 = vpop.permute.xlu0 %365
  %369 = vset.pattern.permute.xlu0 0
  %370 = vperm.xlu0 %369, %v132
  %v371 = vpop.permute.xlu0 %370
  %374 = vset.pattern.permute.xlu0 0
  %375 = vperm.xlu0 %374, %v133
  %v376 = vpop.permute.xlu0 %375
  %379 = vset.pattern.permute.xlu0 0
  %380 = vperm.xlu0 %379, %v134
  %v381 = vpop.permute.xlu0 %380
  %384 = vset.pattern.permute.xlu0 0
  %385 = vperm.xlu0 %384, %v135
  %v386 = vpop.permute.xlu0 %385
  %389 = vset.pattern.permute.xlu0 0
  %390 = vperm.xlu0 %389, %v136
  %v391 = vpop.permute.xlu0 %390
  %394 = vset.pattern.permute.xlu0 0
  %395 = vperm.xlu0 %394, %v137
  %v396 = vpop.permute.xlu0 %395
  %399 = vset.pattern.permute.xlu0 0
  %400 = vperm.xlu0 %399, %v138
  %v401 = vpop.permute.xlu0 %400
  %404 = vset.pattern.permute.xlu0 0
  %405 = vperm.xlu0 %404, %v139
  %v406 = vpop.permute.xlu0 %405
  %409 = vset.pattern.permute.xlu0 0
  %410 = vperm.xlu0 %409, %v140
  %v411 = vpop.permute.xlu0 %410
  %414 = vset.pattern.permute.xlu0 0
  %415 = vperm.xlu0 %414, %v141
  %v416 = vpop.permute.xlu0 %415
  %419 = vset.pattern.permute.xlu0 0
  %420 = vperm.xlu0 %419, %v142
  %v421 = vpop.permute.xlu0 %420
  %424 = vset.pattern.permute.xlu0 0
  %425 = vperm.xlu0 %424, %v143
  %v426 = vpop.permute.xlu0 %425
  %429 = vset.pattern.permute.xlu0 0
  %430 = vperm.xlu0 %429, %v144
  %v431 = vpop.permute.xlu0 %430
  %434 = vset.pattern.permute.xlu0 0
  %435 = vperm.xlu0 %434, %v145
  %v436 = vpop.permute.xlu0 %435
  %439 = vset.pattern.permute.xlu0 0
  %440 = vperm.xlu0 %439, %v146
  %v441 = vpop.permute.xlu0 %440
  %444 = vset.pattern.permute.xlu0 0
  %445 = vperm.xlu0 %444, %v147
  %v446 = vpop.permute.xlu0 %445
  %449 = vset.pattern.permute.xlu0 0
  %450 = vperm.xlu0 %449, %v148
  %v451 = vpop.permute.xlu0 %450
  %454 = vset.pattern.permute.xlu0 0
  %455 = vperm.xlu0 %454, %v149
  %v456 = vpop.permute.xlu0 %455
  %459 = vset.pattern.permute.xlu0 0
  %460 = vperm.xlu0 %459, %v150
  %v461 = vpop.permute.xlu0 %460
  %464 = vset.pattern.permute.xlu0 0
  %465 = vperm.xlu0 %464, %v151
  %v466 = vpop.permute.xlu0 %465
  %469 = vset.pattern.permute.xlu0 0
  %470 = vperm.xlu0 %469, %v152
  %v471 = vpop.permute.xlu0 %470
  %vm473 = vcmask 261120
  %v475 = vsel %vm473, %v21, 0
  %v478 = vsel %vm473, %v22, 0
  %v481 = vsel %vm473, %v23, 0
  %v484 = vsel %vm473, %v24, 0
  %v487 = vsel %vm473, %v25, 0
  %v490 = vsel %vm473, %v26, 0
  %v493 = vsel %vm473, %v27, 0
  %v496 = vsel %vm473, %v28, 0
  %v499 = vsel %vm473, %v29, 0
  %v502 = vsel %vm473, %v30, 0
  %v505 = vsel %vm473, %v31, 0
  %v508 = vsel %vm473, %v32, 0
  %v511 = vsel %vm473, %v33, 0
  %v514 = vsel %vm473, %v34, 0
  %v517 = vsel %vm473, %v35, 0
  %v520 = vsel %vm473, %v36, 0
  %v523 = vsel %vm473, %v37, 0
  %v526 = vsel %vm473, %v38, 0
  %v529 = vsel %vm473, %v39, 0
  %v532 = vsel %vm473, %v40, 0
  %v535 = vsel %vm473, %v41, 0
  %v538 = vsel %vm473, %v42, 0
  %v541 = vsel %vm473, %v43, 0
  %v544 = vsel %vm473, %v44, 0
  %v547 = vsel %vm473, %v45, 0
  %v550 = vsel %vm473, %v46, 0
  %v553 = vsel %vm473, %v47, 0
  %v556 = vsel %vm473, %v48, 0
  %v559 = vsel %vm473, %v49, 0
  %v562 = vsel %vm473, %v50, 0
  %v565 = vsel %vm473, %v51, 0
  %v568 = vsel %vm473, %v52, 0
  %v571 = vsel %vm473, %v53, 0
  %v574 = vsel %vm473, %v54, 0
  %v577 = vsel %vm473, %v55, 0
  %v580 = vsel %vm473, %v56, 0
  %v583 = vsel %vm473, %v57, 0
  %v586 = vsel %vm473, %v58, 0
  %v589 = vsel %vm473, %v59, 0
  %v592 = vsel %vm473, %v60, 0
  %v595 = vsel %vm473, %v61, 0
  %v598 = vsel %vm473, %v62, 0
  %v601 = vsel %vm473, %v63, 0
  %v604 = vsel %vm473, %v64, 0
  %v607 = vsel %vm473, %v65, 0
  %v610 = vsel %vm473, %v66, 0
  %v613 = vsel %vm473, %v67, 0
  %v616 = vsel %vm473, %v68, 0
  %v619 = vsel %vm473, %v69, 0
  %v622 = vsel %vm473, %v70, 0
  %v625 = vsel %vm473, %v71, 0
  %v628 = vsel %vm473, %v72, 0
  %v631 = vsel %vm473, %v73, 0
  %v634 = vsel %vm473, %v74, 0
  %v637 = vsel %vm473, %v75, 0
  %v640 = vsel %vm473, %v76, 0
  %v643 = vsel %vm473, %v77, 0
  %v646 = vsel %vm473, %v78, 0
  %v649 = vsel %vm473, %v79, 0
  %v652 = vsel %vm473, %v80, 0
  %v655 = vsel %vm473, %v81, 0
  %v658 = vsel %vm473, %v82, 0
  %v661 = vsel %vm473, %v83, 0
  %v664 = vsel %vm473, %v84, 0
  %666 = vmatprep.subr.mxu0 0.0
  %667 = vmatpush1.msra.mxu0 %v85
  %668 = vmatprep.subr.mxu0 0.0
  %669 = vmatpush1.msra.mxu0 %v86
  %670 = vmatprep.subr.mxu0 0.0
  %671 = vmatpush1.msra.mxu0 %v87
  %672 = vmatprep.subr.mxu0 0.0
  %673 = vmatpush1.msra.mxu0 %v88
  %674 = vmatprep.subr.mxu0 0.0
  %675 = vmatpush1.msra.mxu0 0.0
  %676 = vmatprep.subr.mxu0 0.0
  %677 = vmatpush1.msra.mxu0 0.0
  %678 = vmatprep.subr.mxu0 0.0
  %679 = vmatpush1.msra.mxu0 0.0
  %680 = vmatprep.subr.mxu0 0.0
  %681 = vmatpush1.msra.mxu0 0.0
  %682 = vmatprep.subr.mxu0 0.0
  %683 = vmatpush1.msra.mxu0 0.0
  %684 = vmatprep.subr.mxu0 0.0
  %685 = vmatpush1.msra.mxu0 0.0
  %686 = vmatprep.subr.mxu0 0.0
  %687 = vmatpush1.msra.mxu0 0.0
  %688 = vmatprep.subr.mxu0 0.0
  %689 = vmatpush1.msra.mxu0 0.0
  %690 = vmatprep.subr.mxu0 0.0
  %691 = vmatpush1.msra.mxu0 0.0
  %692 = vmatprep.subr.mxu0 0.0
  %693 = vmatpush1.msra.mxu0 0.0
  %694 = vmatprep.subr.mxu0 0.0
  %695 = vmatpush1.msra.mxu0 0.0
  %696 = vmatprep.subr.mxu0 0.0
  %697 = vmatpush1.msra.mxu0 0.0
  %698 = vmatprep.subr.mxu0 0.0
  %699 = vmatpush1.msra.mxu0 0.0
  %700 = vmatprep.subr.mxu0 0.0
  %701 = vmatpush1.msra.mxu0 0.0
  %702 = vmatprep.subr.mxu0 0.0
  %703 = vmatpush1.msra.mxu0 0.0
  %704 = vmatprep.subr.mxu0 0.0
  %705 = vmatpush1.msra.mxu0 0.0
  %706 = vmatprep.subr.mxu0 0.0
  %707 = vmatpush1.msra.mxu0 0.0
  %708 = vmatprep.subr.mxu0 0.0
  %709 = vmatpush1.msra.mxu0 0.0
  %710 = vmatprep.subr.mxu0 0.0
  %711 = vmatpush1.msra.mxu0 0.0
  %712 = vmatprep.subr.mxu0 0.0
  %713 = vmatpush1.msra.mxu0 0.0
  %714 = vmatprep.subr.mxu0 0.0
  %715 = vmatpush1.msra.mxu0 0.0
  %716 = vmatprep.subr.mxu0 0.0
  %717 = vmatpush1.msra.mxu0 0.0
  %718 = vmatprep.subr.mxu0 0.0
  %719 = vmatpush1.msra.mxu0 0.0
  %720 = vmatprep.subr.mxu0 0.0
  %721 = vmatpush1.msra.mxu0 0.0
  %722 = vmatprep.subr.mxu0 0.0
  %723 = vmatpush1.msra.mxu0 0.0
  %724 = vmatprep.subr.mxu0 0.0
  %725 = vmatpush1.msra.mxu0 0.0
  %726 = vmatprep.subr.mxu0 0.0
  %727 = vmatpush1.msra.mxu0 0.0
  %728 = vmatprep.subr.mxu0 0.0
  %729 = vmatpush1.msra.mxu0 0.0
  %730 = vmatprep.mubr.f32.mxu0 0.0
  %731 = vmatmul.mubr.f32.gmra.mrb[0].mxu0 %v475
  %v732 = vpop.f32.mrb[0].mxu0
  %v733 = vadd.f32 %v156, %v732
  %v734 = vpop.f32.mrb[0].mxu0
  %735 = vmatprep.mubr.f32.mxu0 0.0
  %736 = vmatmul.mubr.f32.gmra.mrb[0].mxu0 %v478
  %v737 = vpop.f32.mrb[0].mxu0
  %v738 = vadd.f32 %v161, %v737
  %v739 = vpop.f32.mrb[0].mxu0
  %740 = vmatprep.mubr.f32.mxu0 0.0
  %741 = vmatmul.mubr.f32.gmra.mrb[0].mxu0 %v481
  %v742 = vpop.f32.mrb[0].mxu0
  %v743 = vadd.f32 %v166, %v742
  %v744 = vpop.f32.mrb[0].mxu0
  %745 = vmatprep.mubr.f32.mxu0 0.0
  %746 = vmatmul.mubr.f32.gmra.mrb[0].mxu0 %v484
  %v747 = vpop.f32.mrb[0].mxu0
  %v748 = vadd.f32 %v171, %v747
  %v749 = vpop.f32.mrb[0].mxu0
  %750 = vmatprep.mubr.f32.mxu0 0.0
  %751 = vmatmul.mubr.f32.gmra.mrb[0].mxu0 %v487
  %v752 = vpop.f32.mrb[0].mxu0
  %v753 = vadd.f32 %v176, %v752
  %v754 = vpop.f32.mrb[0].mxu0
  %755 = vmatprep.mubr.f32.mxu0 0.0
  %756 = vmatmul.mubr.f32.gmra.mrb[0].mxu0 %v490
  %v757 = vpop.f32.mrb[0].mxu0
  %v758 = vadd.f32 %v181, %v757
  %v759 = vpop.f32.mrb[0].mxu0
  %760 = vmatprep.mubr.f32.mxu0 0.0
  %761 = vmatmul.mubr.f32.gmra.mrb[0].mxu0 %v493
  %v762 = vpop.f32.mrb[0].mxu0
  %v763 = vadd.f32 %v186, %v762
  %v764 = vpop.f32.mrb[0].mxu0
  %765 = vmatprep.mubr.f32.mxu0 0.0
  %766 = vmatmul.mubr.f32.gmra.mrb[0].mxu0 %v496
  %v767 = vpop.f32.mrb[0].mxu0
  %v768 = vadd.f32 %v191, %v767
  %v769 = vpop.f32.mrb[0].mxu0
  %770 = vmatprep.mubr.f32.mxu0 0.0
  %771 = vmatmul.mubr.f32.gmra.mrb[0].mxu0 %v499
  %v772 = vpop.f32.mrb[0].mxu0
  %v773 = vadd.f32 %v196, %v772
  %v774 = vpop.f32.mrb[0].mxu0
  %775 = vmatprep.mubr.f32.mxu0 0.0
  %776 = vmatmul.mubr.f32.gmra.mrb[0].mxu0 %v502
  %v777 = vpop.f32.mrb[0].mxu0
  %v778 = vadd.f32 %v201, %v777
  %v779 = vpop.f32.mrb[0].mxu0
  %780 = vmatprep.mubr.f32.mxu0 0.0
  %781 = vmatmul.mubr.f32.gmra.mrb[0].mxu0 %v505
  %v782 = vpop.f32.mrb[0].mxu0
  %v783 = vadd.f32 %v206, %v782
  %v784 = vpop.f32.mrb[0].mxu0
  %785 = vmatprep.mubr.f32.mxu0 0.0
  %786 = vmatmul.mubr.f32.gmra.mrb[0].mxu0 %v508
  %v787 = vpop.f32.mrb[0].mxu0
  %v788 = vadd.f32 %v211, %v787
  %v789 = vpop.f32.mrb[0].mxu0
  %790 = vmatprep.mubr.f32.mxu0 0.0
  %791 = vmatmul.mubr.f32.gmra.mrb[0].mxu0 %v511
  %v792 = vpop.f32.mrb[0].mxu0
  %v793 = vadd.f32 %v216, %v792
  %v794 = vpop.f32.mrb[0].mxu0
  %795 = vmatprep.mubr.f32.mxu0 0.0
  %796 = vmatmul.mubr.f32.gmra.mrb[0].mxu0 %v514
  %v797 = vpop.f32.mrb[0].mxu0
  %v798 = vadd.f32 %v221, %v797
  %v799 = vpop.f32.mrb[0].mxu0
  %800 = vmatprep.mubr.f32.mxu0 0.0
  %801 = vmatmul.mubr.f32.gmra.mrb[0].mxu0 %v517
  %v802 = vpop.f32.mrb[0].mxu0
  %v803 = vadd.f32 %v226, %v802
  %v804 = vpop.f32.mrb[0].mxu0
  %805 = vmatprep.mubr.f32.mxu0 0.0
  %806 = vmatmul.mubr.f32.gmra.mrb[0].mxu0 %v520
  %v807 = vpop.f32.mrb[0].mxu0
  %v808 = vadd.f32 %v231, %v807
  %v809 = vpop.f32.mrb[0].mxu0
  %810 = vmatprep.mubr.f32.mxu0 0.0
  %811 = vmatmul.mubr.f32.gmra.mrb[0].mxu0 %v523
  %v812 = vpop.f32.mrb[0].mxu0
  %v813 = vadd.f32 %v236, %v812
  %v814 = vpop.f32.mrb[0].mxu0
  %815 = vmatprep.mubr.f32.mxu0 0.0
  %816 = vmatmul.mubr.f32.gmra.mrb[0].mxu0 %v526
  %v817 = vpop.f32.mrb[0].mxu0
  %v818 = vadd.f32 %v241, %v817
  %v819 = vpop.f32.mrb[0].mxu0
  %820 = vmatprep.mubr.f32.mxu0 0.0
  %821 = vmatmul.mubr.f32.gmra.mrb[0].mxu0 %v529
  %v822 = vpop.f32.mrb[0].mxu0
  %v823 = vadd.f32 %v246, %v822
  %v824 = vpop.f32.mrb[0].mxu0
  %825 = vmatprep.mubr.f32.mxu0 0.0
  %826 = vmatmul.mubr.f32.gmra.mrb[0].mxu0 %v532
  %v827 = vpop.f32.mrb[0].mxu0
  %v828 = vadd.f32 %v251, %v827
  %v829 = vpop.f32.mrb[0].mxu0
  %830 = vmatprep.mubr.f32.mxu0 0.0
  %831 = vmatmul.mubr.f32.gmra.mrb[0].mxu0 %v535
  %v832 = vpop.f32.mrb[0].mxu0
  %v833 = vadd.f32 %v256, %v832
  %v834 = vpop.f32.mrb[0].mxu0
  %835 = vmatprep.mubr.f32.mxu0 0.0
  %836 = vmatmul.mubr.f32.gmra.mrb[0].mxu0 %v538
  %v837 = vpop.f32.mrb[0].mxu0
  %v838 = vadd.f32 %v261, %v837
  %v839 = vpop.f32.mrb[0].mxu0
  %840 = vmatprep.mubr.f32.mxu0 0.0
  %841 = vmatmul.mubr.f32.gmra.mrb[0].mxu0 %v541
  %v842 = vpop.f32.mrb[0].mxu0
  %v843 = vadd.f32 %v266, %v842
  %v844 = vpop.f32.mrb[0].mxu0
  %845 = vmatprep.mubr.f32.mxu0 0.0
  %846 = vmatmul.mubr.f32.gmra.mrb[0].mxu0 %v544
  %v847 = vpop.f32.mrb[0].mxu0
  %v848 = vadd.f32 %v271, %v847
  %v849 = vpop.f32.mrb[0].mxu0
  %850 = vmatprep.mubr.f32.mxu0 0.0
  %851 = vmatmul.mubr.f32.gmra.mrb[0].mxu0 %v547
  %v852 = vpop.f32.mrb[0].mxu0
  %v853 = vadd.f32 %v276, %v852
  %v854 = vpop.f32.mrb[0].mxu0
  %855 = vmatprep.mubr.f32.mxu0 0.0
  %856 = vmatmul.mubr.f32.gmra.mrb[0].mxu0 %v550
  %v857 = vpop.f32.mrb[0].mxu0
  %v858 = vadd.f32 %v281, %v857
  %v859 = vpop.f32.mrb[0].mxu0
  %860 = vmatprep.mubr.f32.mxu0 0.0
  %861 = vmatmul.mubr.f32.gmra.mrb[0].mxu0 %v553
  %v862 = vpop.f32.mrb[0].mxu0
  %v863 = vadd.f32 %v286, %v862
  %v864 = vpop.f32.mrb[0].mxu0
  %865 = vmatprep.mubr.f32.mxu0 0.0
  %866 = vmatmul.mubr.f32.gmra.mrb[0].mxu0 %v556
  %v867 = vpop.f32.mrb[0].mxu0
  %v868 = vadd.f32 %v291, %v867
  %v869 = vpop.f32.mrb[0].mxu0
  %870 = vmatprep.mubr.f32.mxu0 0.0
  %871 = vmatmul.mubr.f32.gmra.mrb[0].mxu0 %v559
  %v872 = vpop.f32.mrb[0].mxu0
  %v873 = vadd.f32 %v296, %v872
  %v874 = vpop.f32.mrb[0].mxu0
  %875 = vmatprep.mubr.f32.mxu0 0.0
  %876 = vmatmul.mubr.f32.gmra.mrb[0].mxu0 %v562
  %v877 = vpop.f32.mrb[0].mxu0
  %v878 = vadd.f32 %v301, %v877
  %v879 = vpop.f32.mrb[0].mxu0
  %880 = vmatprep.mubr.f32.mxu0 0.0
  %881 = vmatmul.mubr.f32.gmra.mrb[0].mxu0 %v565
  %v882 = vpop.f32.mrb[0].mxu0
  %v883 = vadd.f32 %v306, %v882
  %v884 = vpop.f32.mrb[0].mxu0
  %885 = vmatprep.mubr.f32.mxu0 0.0
  %886 = vmatmul.mubr.f32.gmra.mrb[0].mxu0 %v568
  %v887 = vpop.f32.mrb[0].mxu0
  %v888 = vadd.f32 %v311, %v887
  %v889 = vpop.f32.mrb[0].mxu0
  %890 = vmatprep.mubr.f32.mxu0 0.0
  %891 = vmatmul.mubr.f32.gmra.mrb[0].mxu0 %v571
  %v892 = vpop.f32.mrb[0].mxu0
  %v893 = vadd.f32 %v316, %v892
  %v894 = vpop.f32.mrb[0].mxu0
  %895 = vmatprep.mubr.f32.mxu0 0.0
  %896 = vmatmul.mubr.f32.gmra.mrb[0].mxu0 %v574
  %v897 = vpop.f32.mrb[0].mxu0
  %v898 = vadd.f32 %v321, %v897
  %v899 = vpop.f32.mrb[0].mxu0
  %900 = vmatprep.mubr.f32.mxu0 0.0
  %901 = vmatmul.mubr.f32.gmra.mrb[0].mxu0 %v577
  %v902 = vpop.f32.mrb[0].mxu0
  %v903 = vadd.f32 %v326, %v902
  %v904 = vpop.f32.mrb[0].mxu0
  %905 = vmatprep.mubr.f32.mxu0 0.0
  %906 = vmatmul.mubr.f32.gmra.mrb[0].mxu0 %v580
  %v907 = vpop.f32.mrb[0].mxu0
  %v908 = vadd.f32 %v331, %v907
  %v909 = vpop.f32.mrb[0].mxu0
  %910 = vmatprep.mubr.f32.mxu0 0.0
  %911 = vmatmul.mubr.f32.gmra.mrb[0].mxu0 %v583
  %v912 = vpop.f32.mrb[0].mxu0
  %v913 = vadd.f32 %v336, %v912
  %v914 = vpop.f32.mrb[0].mxu0
  %915 = vmatprep.mubr.f32.mxu0 0.0
  %916 = vmatmul.mubr.f32.gmra.mrb[0].mxu0 %v586
  %v917 = vpop.f32.mrb[0].mxu0
  %v918 = vadd.f32 %v341, %v917
  %v919 = vpop.f32.mrb[0].mxu0
  %920 = vmatprep.mubr.f32.mxu0 0.0
  %921 = vmatmul.mubr.f32.gmra.mrb[0].mxu0 %v589
  %v922 = vpop.f32.mrb[0].mxu0
  %v923 = vadd.f32 %v346, %v922
  %v924 = vpop.f32.mrb[0].mxu0
  %925 = vmatprep.mubr.f32.mxu0 0.0
  %926 = vmatmul.mubr.f32.gmra.mrb[0].mxu0 %v592
  %v927 = vpop.f32.mrb[0].mxu0
  %v928 = vadd.f32 %v351, %v927
  %v929 = vpop.f32.mrb[0].mxu0
  %930 = vmatprep.mubr.f32.mxu0 0.0
  %931 = vmatmul.mubr.f32.gmra.mrb[0].mxu0 %v595
  %v932 = vpop.f32.mrb[0].mxu0
  %v933 = vadd.f32 %v356, %v932
  %v934 = vpop.f32.mrb[0].mxu0
  %935 = vmatprep.mubr.f32.mxu0 0.0
  %936 = vmatmul.mubr.f32.gmra.mrb[0].mxu0 %v598
  %v937 = vpop.f32.mrb[0].mxu0
  %v938 = vadd.f32 %v361, %v937
  %v939 = vpop.f32.mrb[0].mxu0
  %940 = vmatprep.mubr.f32.mxu0 0.0
  %941 = vmatmul.mubr.f32.gmra.mrb[0].mxu0 %v601
  %v942 = vpop.f32.mrb[0].mxu0
  %v943 = vadd.f32 %v366, %v942
  %v944 = vpop.f32.mrb[0].mxu0
  %945 = vmatprep.mubr.f32.mxu0 0.0
  %946 = vmatmul.mubr.f32.gmra.mrb[0].mxu0 %v604
  %v947 = vpop.f32.mrb[0].mxu0
  %v948 = vadd.f32 %v371, %v947
  %v949 = vpop.f32.mrb[0].mxu0
  %950 = vmatprep.mubr.f32.mxu0 0.0
  %951 = vmatmul.mubr.f32.gmra.mrb[0].mxu0 %v607
  %v952 = vpop.f32.mrb[0].mxu0
  %v953 = vadd.f32 %v376, %v952
  %v954 = vpop.f32.mrb[0].mxu0
  %955 = vmatprep.mubr.f32.mxu0 0.0
  %956 = vmatmul.mubr.f32.gmra.mrb[0].mxu0 %v610
  %v957 = vpop.f32.mrb[0].mxu0
  %v958 = vadd.f32 %v381, %v957
  %v959 = vpop.f32.mrb[0].mxu0
  %960 = vmatprep.mubr.f32.mxu0 0.0
  %961 = vmatmul.mubr.f32.gmra.mrb[0].mxu0 %v613
  %v962 = vpop.f32.mrb[0].mxu0
  %v963 = vadd.f32 %v386, %v962
  %v964 = vpop.f32.mrb[0].mxu0
  %965 = vmatprep.mubr.f32.mxu0 0.0
  %966 = vmatmul.mubr.f32.gmra.mrb[0].mxu0 %v616
  %v967 = vpop.f32.mrb[0].mxu0
  %v968 = vadd.f32 %v391, %v967
  %v969 = vpop.f32.mrb[0].mxu0
  %970 = vmatprep.mubr.f32.mxu0 0.0
  %971 = vmatmul.mubr.f32.gmra.mrb[0].mxu0 %v619
  %v972 = vpop.f32.mrb[0].mxu0
  %v973 = vadd.f32 %v396, %v972
  %v974 = vpop.f32.mrb[0].mxu0
  %975 = vmatprep.mubr.f32.mxu0 0.0
  %976 = vmatmul.mubr.f32.gmra.mrb[0].mxu0 %v622
  %v977 = vpop.f32.mrb[0].mxu0
  %v978 = vadd.f32 %v401, %v977
  %v979 = vpop.f32.mrb[0].mxu0
  %980 = vmatprep.mubr.f32.mxu0 0.0
  %981 = vmatmul.mubr.f32.gmra.mrb[0].mxu0 %v625
  %v982 = vpop.f32.mrb[0].mxu0
  %v983 = vadd.f32 %v406, %v982
  %v984 = vpop.f32.mrb[0].mxu0
  %985 = vmatprep.mubr.f32.mxu0 0.0
  %986 = vmatmul.mubr.f32.gmra.mrb[0].mxu0 %v628
  %v987 = vpop.f32.mrb[0].mxu0
  %v988 = vadd.f32 %v411, %v987
  %v989 = vpop.f32.mrb[0].mxu0
  %990 = vmatprep.mubr.f32.mxu0 0.0
  %991 = vmatmul.mubr.f32.gmra.mrb[0].mxu0 %v631
  %v992 = vpop.f32.mrb[0].mxu0
  %v993 = vadd.f32 %v416, %v992
  %v994 = vpop.f32.mrb[0].mxu0
  %995 = vmatprep.mubr.f32.mxu0 0.0
  %996 = vmatmul.mubr.f32.gmra.mrb[0].mxu0 %v634
  %v997 = vpop.f32.mrb[0].mxu0
  %v998 = vadd.f32 %v421, %v997
  %v999 = vpop.f32.mrb[0].mxu0
  %1000 = vmatprep.mubr.f32.mxu0 0.0
  %1001 = vmatmul.mubr.f32.gmra.mrb[0].mxu0 %v637
  %v1002 = vpop.f32.mrb[0].mxu0
  %v1003 = vadd.f32 %v426, %v1002
  %v1004 = vpop.f32.mrb[0].mxu0
  %1005 = vmatprep.mubr.f32.mxu0 0.0
  %1006 = vmatmul.mubr.f32.gmra.mrb[0].mxu0 %v640
  %v1007 = vpop.f32.mrb[0].mxu0
  %v1008 = vadd.f32 %v431, %v1007
  %v1009 = vpop.f32.mrb[0].mxu0
  %1010 = vmatprep.mubr.f32.mxu0 0.0
  %1011 = vmatmul.mubr.f32.gmra.mrb[0].mxu0 %v643
  %v1012 = vpop.f32.mrb[0].mxu0
  %v1013 = vadd.f32 %v436, %v1012
  %v1014 = vpop.f32.mrb[0].mxu0
  %1015 = vmatprep.mubr.f32.mxu0 0.0
  %1016 = vmatmul.mubr.f32.gmra.mrb[0].mxu0 %v646
  %v1017 = vpop.f32.mrb[0].mxu0
  %v1018 = vadd.f32 %v441, %v1017
  %v1019 = vpop.f32.mrb[0].mxu0
  %1020 = vmatprep.mubr.f32.mxu0 0.0
  %1021 = vmatmul.mubr.f32.gmra.mrb[0].mxu0 %v649
  %v1022 = vpop.f32.mrb[0].mxu0
  %v1023 = vadd.f32 %v446, %v1022
  %v1024 = vpop.f32.mrb[0].mxu0
  %1025 = vmatprep.mubr.f32.mxu0 0.0
  %1026 = vmatmul.mubr.f32.gmra.mrb[0].mxu0 %v652
  %v1027 = vpop.f32.mrb[0].mxu0
  %v1028 = vadd.f32 %v451, %v1027
  %v1029 = vpop.f32.mrb[0].mxu0
  %1030 = vmatprep.mubr.f32.mxu0 0.0
  %1031 = vmatmul.mubr.f32.gmra.mrb[0].mxu0 %v655
  %v1032 = vpop.f32.mrb[0].mxu0
  %v1033 = vadd.f32 %v456, %v1032
  %v1034 = vpop.f32.mrb[0].mxu0
  %1035 = vmatprep.mubr.f32.mxu0 0.0
  %1036 = vmatmul.mubr.f32.gmra.mrb[0].mxu0 %v658
  %v1037 = vpop.f32.mrb[0].mxu0
  %v1038 = vadd.f32 %v461, %v1037
  %v1039 = vpop.f32.mrb[0].mxu0
  %1040 = vmatprep.mubr.f32.mxu0 0.0
  %1041 = vmatmul.mubr.f32.gmra.mrb[0].mxu0 %v661
  %v1042 = vpop.f32.mrb[0].mxu0
  %v1043 = vadd.f32 %v466, %v1042
  %v1044 = vpop.f32.mrb[0].mxu0
  %1045 = vmatprep.mubr.f32.mxu0 0.0
  %1046 = vmatmul.mubr.f32.gmra.mrb[0].mxu0 %v664
  %v1047 = vpop.f32.mrb[0].mxu0
  %v1048 = vadd.f32 %v471, %v1047
  %v1049 = vpop.f32.mrb[0].mxu0
  %1050 = vdwg.mxu0
  %v1051 = vmax.f32 %v733, 0.0
  %v1052 = vmax.f32 %v738, 0.0
  %v1053 = vmax.f32 %v743, 0.0
  %v1054 = vmax.f32 %v748, 0.0
  %v1055 = vmax.f32 %v753, 0.0
  %v1056 = vmax.f32 %v758, 0.0
  %v1057 = vmax.f32 %v763, 0.0
  %v1058 = vmax.f32 %v768, 0.0
  %v1059 = vmax.f32 %v773, 0.0
  %v1060 = vmax.f32 %v778, 0.0
  %v1061 = vmax.f32 %v783, 0.0
  %v1062 = vmax.f32 %v788, 0.0
  %v1063 = vmax.f32 %v793, 0.0
  %v1064 = vmax.f32 %v798, 0.0
  %v1065 = vmax.f32 %v803, 0.0
  %v1066 = vmax.f32 %v808, 0.0
  %v1067 = vmax.f32 %v813, 0.0
  %v1068 = vmax.f32 %v818, 0.0
  %v1069 = vmax.f32 %v823, 0.0
  %v1070 = vmax.f32 %v828, 0.0
  %v1071 = vmax.f32 %v833, 0.0
  %v1072 = vmax.f32 %v838, 0.0
  %v1073 = vmax.f32 %v843, 0.0
  %v1074 = vmax.f32 %v848, 0.0
  %v1075 = vmax.f32 %v853, 0.0
  %v1076 = vmax.f32 %v858, 0.0
  %v1077 = vmax.f32 %v863, 0.0
  %v1078 = vmax.f32 %v868, 0.0
  %v1079 = vmax.f32 %v873, 0.0
  %v1080 = vmax.f32 %v878, 0.0
  %v1081 = vmax.f32 %v883, 0.0
  %v1082 = vmax.f32 %v888, 0.0
  %v1083 = vmax.f32 %v893, 0.0
  %v1084 = vmax.f32 %v898, 0.0
  %v1085 = vmax.f32 %v903, 0.0
  %v1086 = vmax.f32 %v908, 0.0
  %v1087 = vmax.f32 %v913, 0.0
  %v1088 = vmax.f32 %v918, 0.0
  %v1089 = vmax.f32 %v923, 0.0
  %v1090 = vmax.f32 %v928, 0.0
  %v1091 = vmax.f32 %v933, 0.0
  %v1092 = vmax.f32 %v938, 0.0
  %v1093 = vmax.f32 %v943, 0.0
  %v1094 = vmax.f32 %v948, 0.0
  %v1095 = vmax.f32 %v953, 0.0
  %v1096 = vmax.f32 %v958, 0.0
  %v1097 = vmax.f32 %v963, 0.0
  %v1098 = vmax.f32 %v968, 0.0
  %v1099 = vmax.f32 %v973, 0.0
  %v1100 = vmax.f32 %v978, 0.0
  %v1101 = vmax.f32 %v983, 0.0
  %v1102 = vmax.f32 %v988, 0.0
  %v1103 = vmax.f32 %v993, 0.0
  %v1104 = vmax.f32 %v998, 0.0
  %v1105 = vmax.f32 %v1003, 0.0
  %v1106 = vmax.f32 %v1008, 0.0
  %v1107 = vmax.f32 %v1013, 0.0
  %v1108 = vmax.f32 %v1018, 0.0
  %v1109 = vmax.f32 %v1023, 0.0
  %v1110 = vmax.f32 %v1028, 0.0
  %v1111 = vmax.f32 %v1033, 0.0
  %v1112 = vmax.f32 %v1038, 0.0
  %v1113 = vmax.f32 %v1043, 0.0
  %v1114 = vmax.f32 %v1048, 0.0
  %v1115 = vld [vmem:[%s3] sm:$0xff]
  %v1116 = vld [vmem:[%s3 + $0x8] sm:$0xff]
  %v1117 = vld [vmem:[%s3 + $0x10] sm:$0xff]
  %v1118 = vld [vmem:[%s3 + $0x18] sm:$0xff]
  %v1119 = vld [vmem:[%s3 + $0x20] sm:$0xff]
  %v1120 = vld [vmem:[%s3 + $0x28] sm:$0xff]
  %v1121 = vld [vmem:[%s3 + $0x30] sm:$0xff]
  %v1122 = vld [vmem:[%s3 + $0x38] sm:$0xff]
  %v1123 = vld [vmem:[%s3 + $0x40] sm:$0xff]
  %v1124 = vld [vmem:[%s3 + $0x48] sm:$0xff]
  %v1125 = vld [vmem:[%s3 + $0x50] sm:$0xff]
  %v1126 = vld [vmem:[%s3 + $0x58] sm:$0xff]
  %v1127 = vld [vmem:[%s3 + $0x60] sm:$0xff]
  %v1128 = vld [vmem:[%s3 + $0x68] sm:$0xff]
  %v1129 = vld [vmem:[%s3 + $0x70] sm:$0xff]
  %v1130 = vld [vmem:[%s3 + $0x78] sm:$0xff]
  %v1131 = vld [vmem:[%s3 + $0x80] sm:$0xff]
  %v1132 = vld [vmem:[%s3 + $0x88] sm:$0xff]
  %v1133 = vld [vmem:[%s3 + $0x90] sm:$0xff]
  %v1134 = vld [vmem:[%s3 + $0x98] sm:$0xff]
  %v1135 = vld [vmem:[%s3 + $0xa0] sm:$0xff]
  %v1136 = vld [vmem:[%s3 + $0xa8] sm:$0xff]
  %v1137 = vld [vmem:[%s3 + $0xb0] sm:$0xff]
  %v1138 = vld [vmem:[%s3 + $0xb8] sm:$0xff]
  %v1139 = vld [vmem:[%s3 + $0xc0] sm:$0xff]
  %v1140 = vld [vmem:[%s3 + $0xc8] sm:$0xff]
  %v1141 = vld [vmem:[%s3 + $0xd0] sm:$0xff]
  %v1142 = vld [vmem:[%s3 + $0xd8] sm:$0xff]
  %v1143 = vld [vmem:[%s3 + $0xe0] sm:$0xff]
  %v1144 = vld [vmem:[%s3 + $0xe8] sm:$0xff]
  %v1145 = vld [vmem:[%s3 + $0xf0] sm:$0xff]
  %v1146 = vld [vmem:[%s3 + $0xf8] sm:$0xff]
  %v1147 = vld [vmem:[%s3 + $0x100] sm:$0xff]
  %v1148 = vld [vmem:[%s3 + $0x108] sm:$0xff]
  %v1149 = vld [vmem:[%s3 + $0x110] sm:$0xff]
  %v1150 = vld [vmem:[%s3 + $0x118] sm:$0xff]
  %v1151 = vld [vmem:[%s3 + $0x120] sm:$0xff]
  %v1152 = vld [vmem:[%s3 + $0x128] sm:$0xff]
  %v1153 = vld [vmem:[%s3 + $0x130] sm:$0xff]
  %v1154 = vld [vmem:[%s3 + $0x138] sm:$0xff]
  %v1155 = vld [vmem:[%s3 + $0x140] sm:$0xff]
  %v1156 = vld [vmem:[%s3 + $0x148] sm:$0xff]
  %v1157 = vld [vmem:[%s3 + $0x150] sm:$0xff]
  %v1158 = vld [vmem:[%s3 + $0x158] sm:$0xff]
  %v1159 = vld [vmem:[%s3 + $0x160] sm:$0xff]
  %v1160 = vld [vmem:[%s3 + $0x168] sm:$0xff]
  %v1161 = vld [vmem:[%s3 + $0x170] sm:$0xff]
  %v1162 = vld [vmem:[%s3 + $0x178] sm:$0xff]
  %v1163 = vld [vmem:[%s3 + $0x180] sm:$0xff]
  %v1164 = vld [vmem:[%s3 + $0x188] sm:$0xff]
  %v1165 = vld [vmem:[%s3 + $0x190] sm:$0xff]
  %v1166 = vld [vmem:[%s3 + $0x198] sm:$0xff]
  %v1167 = vld [vmem:[%s3 + $0x1a0] sm:$0xff]
  %v1168 = vld [vmem:[%s3 + $0x1a8] sm:$0xff]
  %v1169 = vld [vmem:[%s3 + $0x1b0] sm:$0xff]
  %v1170 = vld [vmem:[%s3 + $0x1b8] sm:$0xff]
  %v1171 = vld [vmem:[%s3 + $0x1c0] sm:$0xff]
  %v1172 = vld [vmem:[%s3 + $0x1c8] sm:$0xff]
  %v1173 = vld [vmem:[%s3 + $0x1d0] sm:$0xff]
  %v1174 = vld [vmem:[%s3 + $0x1d8] sm:$0xff]
  %v1175 = vld [vmem:[%s3 + $0x1e0] sm:$0xff]
  %v1176 = vld [vmem:[%s3 + $0x1e8] sm:$0xff]
  %v1177 = vld [vmem:[%s3 + $0x1f0] sm:$0xff]
  %v1178 = vld [vmem:[%s3 + $0x1f8] sm:$0xff]
  %1180 = vset.pattern.permute.xlu0 0
  %1181 = vperm.xlu0 %1180, %v1115
  %v1182 = vpop.permute.xlu0 %1181
  %1185 = vset.pattern.permute.xlu0 0
  %1186 = vperm.xlu0 %1185, %v1116
  %v1187 = vpop.permute.xlu0 %1186
  %1190 = vset.pattern.permute.xlu0 0
  %1191 = vperm.xlu0 %1190, %v1117
  %v1192 = vpop.permute.xlu0 %1191
  %1195 = vset.pattern.permute.xlu0 0
  %1196 = vperm.xlu0 %1195, %v1118
  %v1197 = vpop.permute.xlu0 %1196
  %1200 = vset.pattern.permute.xlu0 0
  %1201 = vperm.xlu0 %1200, %v1119
  %v1202 = vpop.permute.xlu0 %1201
  %1205 = vset.pattern.permute.xlu0 0
  %1206 = vperm.xlu0 %1205, %v1120
  %v1207 = vpop.permute.xlu0 %1206
  %1210 = vset.pattern.permute.xlu0 0
  %1211 = vperm.xlu0 %1210, %v1121
  %v1212 = vpop.permute.xlu0 %1211
  %1215 = vset.pattern.permute.xlu0 0
  %1216 = vperm.xlu0 %1215, %v1122
  %v1217 = vpop.permute.xlu0 %1216
  %1220 = vset.pattern.permute.xlu0 0
  %1221 = vperm.xlu0 %1220, %v1123
  %v1222 = vpop.permute.xlu0 %1221
  %1225 = vset.pattern.permute.xlu0 0
  %1226 = vperm.xlu0 %1225, %v1124
  %v1227 = vpop.permute.xlu0 %1226
  %1230 = vset.pattern.permute.xlu0 0
  %1231 = vperm.xlu0 %1230, %v1125
  %v1232 = vpop.permute.xlu0 %1231
  %1235 = vset.pattern.permute.xlu0 0
  %1236 = vperm.xlu0 %1235, %v1126
  %v1237 = vpop.permute.xlu0 %1236
  %1240 = vset.pattern.permute.xlu0 0
  %1241 = vperm.xlu0 %1240, %v1127
  %v1242 = vpop.permute.xlu0 %1241
  %1245 = vset.pattern.permute.xlu0 0
  %1246 = vperm.xlu0 %1245, %v1128
  %v1247 = vpop.permute.xlu0 %1246
  %1250 = vset.pattern.permute.xlu0 0
  %1251 = vperm.xlu0 %1250, %v1129
  %v1252 = vpop.permute.xlu0 %1251
  %1255 = vset.pattern.permute.xlu0 0
  %1256 = vperm.xlu0 %1255, %v1130
  %v1257 = vpop.permute.xlu0 %1256
  %1260 = vset.pattern.permute.xlu0 0
  %1261 = vperm.xlu0 %1260, %v1131
  %v1262 = vpop.permute.xlu0 %1261
  %1265 = vset.pattern.permute.xlu0 0
  %1266 = vperm.xlu0 %1265, %v1132
  %v1267 = vpop.permute.xlu0 %1266
  %1270 = vset.pattern.permute.xlu0 0
  %1271 = vperm.xlu0 %1270, %v1133
  %v1272 = vpop.permute.xlu0 %1271
  %1275 = vset.pattern.permute.xlu0 0
  %1276 = vperm.xlu0 %1275, %v1134
  %v1277 = vpop.permute.xlu0 %1276
  %1280 = vset.pattern.permute.xlu0 0
  %1281 = vperm.xlu0 %1280, %v1135
  %v1282 = vpop.permute.xlu0 %1281
  %1285 = vset.pattern.permute.xlu0 0
  %1286 = vperm.xlu0 %1285, %v1136
  %v1287 = vpop.permute.xlu0 %1286
  %1290 = vset.pattern.permute.xlu0 0
  %1291 = vperm.xlu0 %1290, %v1137
  %v1292 = vpop.permute.xlu0 %1291
  %1295 = vset.pattern.permute.xlu0 0
  %1296 = vperm.xlu0 %1295, %v1138
  %v1297 = vpop.permute.xlu0 %1296
  %1300 = vset.pattern.permute.xlu0 0
  %1301 = vperm.xlu0 %1300, %v1139
  %v1302 = vpop.permute.xlu0 %1301
  %1305 = vset.pattern.permute.xlu0 0
  %1306 = vperm.xlu0 %1305, %v1140
  %v1307 = vpop.permute.xlu0 %1306
  %1310 = vset.pattern.permute.xlu0 0
  %1311 = vperm.xlu0 %1310, %v1141
  %v1312 = vpop.permute.xlu0 %1311
  %1315 = vset.pattern.permute.xlu0 0
  %1316 = vperm.xlu0 %1315, %v1142
  %v1317 = vpop.permute.xlu0 %1316
  %1320 = vset.pattern.permute.xlu0 0
  %1321 = vperm.xlu0 %1320, %v1143
  %v1322 = vpop.permute.xlu0 %1321
  %1325 = vset.pattern.permute.xlu0 0
  %1326 = vperm.xlu0 %1325, %v1144
  %v1327 = vpop.permute.xlu0 %1326
  %1330 = vset.pattern.permute.xlu0 0
  %1331 = vperm.xlu0 %1330, %v1145
  %v1332 = vpop.permute.xlu0 %1331
  %1335 = vset.pattern.permute.xlu0 0
  %1336 = vperm.xlu0 %1335, %v1146
  %v1337 = vpop.permute.xlu0 %1336
  %1340 = vset.pattern.permute.xlu0 0
  %1341 = vperm.xlu0 %1340, %v1147
  %v1342 = vpop.permute.xlu0 %1341
  %1345 = vset.pattern.permute.xlu0 0
  %1346 = vperm.xlu0 %1345, %v1148
  %v1347 = vpop.permute.xlu0 %1346
  %1350 = vset.pattern.permute.xlu0 0
  %1351 = vperm.xlu0 %1350, %v1149
  %v1352 = vpop.permute.xlu0 %1351
  %1355 = vset.pattern.permute.xlu0 0
  %1356 = vperm.xlu0 %1355, %v1150
  %v1357 = vpop.permute.xlu0 %1356
  %1360 = vset.pattern.permute.xlu0 0
  %1361 = vperm.xlu0 %1360, %v1151
  %v1362 = vpop.permute.xlu0 %1361
  %1365 = vset.pattern.permute.xlu0 0
  %1366 = vperm.xlu0 %1365, %v1152
  %v1367 = vpop.permute.xlu0 %1366
  %1370 = vset.pattern.permute.xlu0 0
  %1371 = vperm.xlu0 %1370, %v1153
  %v1372 = vpop.permute.xlu0 %1371
  %1375 = vset.pattern.permute.xlu0 0
  %1376 = vperm.xlu0 %1375, %v1154
  %v1377 = vpop.permute.xlu0 %1376
  %1380 = vset.pattern.permute.xlu0 0
  %1381 = vperm.xlu0 %1380, %v1155
  %v1382 = vpop.permute.xlu0 %1381
  %1385 = vset.pattern.permute.xlu0 0
  %1386 = vperm.xlu0 %1385, %v1156
  %v1387 = vpop.permute.xlu0 %1386
  %1390 = vset.pattern.permute.xlu0 0
  %1391 = vperm.xlu0 %1390, %v1157
  %v1392 = vpop.permute.xlu0 %1391
  %1395 = vset.pattern.permute.xlu0 0
  %1396 = vperm.xlu0 %1395, %v1158
  %v1397 = vpop.permute.xlu0 %1396
  %1400 = vset.pattern.permute.xlu0 0
  %1401 = vperm.xlu0 %1400, %v1159
  %v1402 = vpop.permute.xlu0 %1401
  %1405 = vset.pattern.permute.xlu0 0
  %1406 = vperm.xlu0 %1405, %v1160
  %v1407 = vpop.permute.xlu0 %1406
  %1410 = vset.pattern.permute.xlu0 0
  %1411 = vperm.xlu0 %1410, %v1161
  %v1412 = vpop.permute.xlu0 %1411
  %1415 = vset.pattern.permute.xlu0 0
  %1416 = vperm.xlu0 %1415, %v1162
  %v1417 = vpop.permute.xlu0 %1416
  %1420 = vset.pattern.permute.xlu0 0
  %1421 = vperm.xlu0 %1420, %v1163
  %v1422 = vpop.permute.xlu0 %1421
  %1425 = vset.pattern.permute.xlu0 0
  %1426 = vperm.xlu0 %1425, %v1164
  %v1427 = vpop.permute.xlu0 %1426
  %1430 = vset.pattern.permute.xlu0 0
  %1431 = vperm.xlu0 %1430, %v1165
  %v1432 = vpop.permute.xlu0 %1431
  %1435 = vset.pattern.permute.xlu0 0
  %1436 = vperm.xlu0 %1435, %v1166
  %v1437 = vpop.permute.xlu0 %1436
  %1440 = vset.pattern.permute.xlu0 0
  %1441 = vperm.xlu0 %1440, %v1167
  %v1442 = vpop.permute.xlu0 %1441
  %1445 = vset.pattern.permute.xlu0 0
  %1446 = vperm.xlu0 %1445, %v1168
  %v1447 = vpop.permute.xlu0 %1446
  %1450 = vset.pattern.permute.xlu0 0
  %1451 = vperm.xlu0 %1450, %v1169
  %v1452 = vpop.permute.xlu0 %1451
  %1455 = vset.pattern.permute.xlu0 0
  %1456 = vperm.xlu0 %1455, %v1170
  %v1457 = vpop.permute.xlu0 %1456
  %1460 = vset.pattern.permute.xlu0 0
  %1461 = vperm.xlu0 %1460, %v1171
  %v1462 = vpop.permute.xlu0 %1461
  %1465 = vset.pattern.permute.xlu0 0
  %1466 = vperm.xlu0 %1465, %v1172
  %v1467 = vpop.permute.xlu0 %1466
  %1470 = vset.pattern.permute.xlu0 0
  %1471 = vperm.xlu0 %1470, %v1173
  %v1472 = vpop.permute.xlu0 %1471
  %1475 = vset.pattern.permute.xlu0 0
  %1476 = vperm.xlu0 %1475, %v1174
  %v1477 = vpop.permute.xlu0 %1476
  %1480 = vset.pattern.permute.xlu0 0
  %1481 = vperm.xlu0 %1480, %v1175
  %v1482 = vpop.permute.xlu0 %1481
  %1485 = vset.pattern.permute.xlu0 0
  %1486 = vperm.xlu0 %1485, %v1176
  %v1487 = vpop.permute.xlu0 %1486
  %1490 = vset.pattern.permute.xlu0 0
  %1491 = vperm.xlu0 %1490, %v1177
  %v1492 = vpop.permute.xlu0 %1491
  %1495 = vset.pattern.permute.xlu0 0
  %1496 = vperm.xlu0 %1495, %v1178
  %v1497 = vpop.permute.xlu0 %1496
  %v1499 = vmul.f32 %v1051, %v1182
  %v1500 = vmul.f32 %v1052, %v1187
  %v1501 = vmul.f32 %v1053, %v1192
  %v1502 = vmul.f32 %v1054, %v1197
  %v1503 = vmul.f32 %v1055, %v1202
  %v1504 = vmul.f32 %v1056, %v1207
  %v1505 = vmul.f32 %v1057, %v1212
  %v1506 = vmul.f32 %v1058, %v1217
  %v1507 = vmul.f32 %v1059, %v1222
  %v1508 = vmul.f32 %v1060, %v1227
  %v1509 = vmul.f32 %v1061, %v1232
  %v1510 = vmul.f32 %v1062, %v1237
  %v1511 = vmul.f32 %v1063, %v1242
  %v1512 = vmul.f32 %v1064, %v1247
  %v1513 = vmul.f32 %v1065, %v1252
  %v1514 = vmul.f32 %v1066, %v1257
  %v1515 = vmul.f32 %v1067, %v1262
  %v1516 = vmul.f32 %v1068, %v1267
  %v1517 = vmul.f32 %v1069, %v1272
  %v1518 = vmul.f32 %v1070, %v1277
  %v1519 = vmul.f32 %v1071, %v1282
  %v1520 = vmul.f32 %v1072, %v1287
  %v1521 = vmul.f32 %v1073, %v1292
  %v1522 = vmul.f32 %v1074, %v1297
  %v1523 = vmul.f32 %v1075, %v1302
  %v1524 = vmul.f32 %v1076, %v1307
  %v1525 = vmul.f32 %v1077, %v1312
  %v1526 = vmul.f32 %v1078, %v1317
  %v1527 = vmul.f32 %v1079, %v1322
  %v1528 = vmul.f32 %v1080, %v1327
  %v1529 = vmul.f32 %v1081, %v1332
  %v1530 = vmul.f32 %v1082, %v1337
  %v1531 = vmul.f32 %v1083, %v1342
  %v1532 = vmul.f32 %v1084, %v1347
  %v1533 = vmul.f32 %v1085, %v1352
  %v1534 = vmul.f32 %v1086, %v1357
  %v1535 = vmul.f32 %v1087, %v1362
  %v1536 = vmul.f32 %v1088, %v1367
  %v1537 = vmul.f32 %v1089, %v1372
  %v1538 = vmul.f32 %v1090, %v1377
  %v1539 = vmul.f32 %v1091, %v1382
  %v1540 = vmul.f32 %v1092, %v1387
  %v1541 = vmul.f32 %v1093, %v1392
  %v1542 = vmul.f32 %v1094, %v1397
  %v1543 = vmul.f32 %v1095, %v1402
  %v1544 = vmul.f32 %v1096, %v1407
  %v1545 = vmul.f32 %v1097, %v1412
  %v1546 = vmul.f32 %v1098, %v1417
  %v1547 = vmul.f32 %v1099, %v1422
  %v1548 = vmul.f32 %v1100, %v1427
  %v1549 = vmul.f32 %v1101, %v1432
  %v1550 = vmul.f32 %v1102, %v1437
  %v1551 = vmul.f32 %v1103, %v1442
  %v1552 = vmul.f32 %v1104, %v1447
  %v1553 = vmul.f32 %v1105, %v1452
  %v1554 = vmul.f32 %v1106, %v1457
  %v1555 = vmul.f32 %v1107, %v1462
  %v1556 = vmul.f32 %v1108, %v1467
  %v1557 = vmul.f32 %v1109, %v1472
  %v1558 = vmul.f32 %v1110, %v1477
  %v1559 = vmul.f32 %v1111, %v1482
  %v1560 = vmul.f32 %v1112, %v1487
  %v1561 = vmul.f32 %v1113, %v1492
  %v1562 = vmul.f32 %v1114, %v1497
  %v1563 = vadd.f32 %v1499, %v1500
  %v1564 = vadd.f32 %v1563, %v1501
  %v1565 = vadd.f32 %v1564, %v1502
  %v1566 = vadd.f32 %v1565, %v1503
  %v1567 = vadd.f32 %v1566, %v1504
  %v1568 = vadd.f32 %v1567, %v1505
  %v1569 = vadd.f32 %v1568, %v1506
  %v1570 = vadd.f32 %v1569, %v1507
  %v1571 = vadd.f32 %v1570, %v1508
  %v1572 = vadd.f32 %v1571, %v1509
  %v1573 = vadd.f32 %v1572, %v1510
  %v1574 = vadd.f32 %v1573, %v1511
  %v1575 = vadd.f32 %v1574, %v1512
  %v1576 = vadd.f32 %v1575, %v1513
  %v1577 = vadd.f32 %v1576, %v1514
  %v1578 = vadd.f32 %v1577, %v1515
  %v1579 = vadd.f32 %v1578, %v1516
  %v1580 = vadd.f32 %v1579, %v1517
  %v1581 = vadd.f32 %v1580, %v1518
  %v1582 = vadd.f32 %v1581, %v1519
  %v1583 = vadd.f32 %v1582, %v1520
  %v1584 = vadd.f32 %v1583, %v1521
  %v1585 = vadd.f32 %v1584, %v1522
  %v1586 = vadd.f32 %v1585, %v1523
  %v1587 = vadd.f32 %v1586, %v1524
  %v1588 = vadd.f32 %v1587, %v1525
  %v1589 = vadd.f32 %v1588, %v1526
  %v1590 = vadd.f32 %v1589, %v1527
  %v1591 = vadd.f32 %v1590, %v1528
  %v1592 = vadd.f32 %v1591, %v1529
  %v1593 = vadd.f32 %v1592, %v1530
  %v1594 = vadd.f32 %v1593, %v1531
  %v1595 = vadd.f32 %v1594, %v1532
  %v1596 = vadd.f32 %v1595, %v1533
  %v1597 = vadd.f32 %v1596, %v1534
  %v1598 = vadd.f32 %v1597, %v1535
  %v1599 = vadd.f32 %v1598, %v1536
  %v1600 = vadd.f32 %v1599, %v1537
  %v1601 = vadd.f32 %v1600, %v1538
  %v1602 = vadd.f32 %v1601, %v1539
  %v1603 = vadd.f32 %v1602, %v1540
  %v1604 = vadd.f32 %v1603, %v1541
  %v1605 = vadd.f32 %v1604, %v1542
  %v1606 = vadd.f32 %v1605, %v1543
  %v1607 = vadd.f32 %v1606, %v1544
  %v1608 = vadd.f32 %v1607, %v1545
  %v1609 = vadd.f32 %v1608, %v1546
  %v1610 = vadd.f32 %v1609, %v1547
  %v1611 = vadd.f32 %v1610, %v1548
  %v1612 = vadd.f32 %v1611, %v1549
  %v1613 = vadd.f32 %v1612, %v1550
  %v1614 = vadd.f32 %v1613, %v1551
  %v1615 = vadd.f32 %v1614, %v1552
  %v1616 = vadd.f32 %v1615, %v1553
  %v1617 = vadd.f32 %v1616, %v1554
  %v1618 = vadd.f32 %v1617, %v1555
  %v1619 = vadd.f32 %v1618, %v1556
  %v1620 = vadd.f32 %v1619, %v1557
  %v1621 = vadd.f32 %v1620, %v1558
  %v1622 = vadd.f32 %v1621, %v1559
  %v1623 = vadd.f32 %v1622, %v1560
  %v1624 = vadd.f32 %v1623, %v1561
  %v1625 = vadd.f32 %v1624, %v1562
  %v1626 = vrot.slane %v1625, 4
  %v1627 = vadd.f32 %v1625, %v1626
  %v1628 = vrot.slane %v1627, 2
  %v1629 = vadd.f32 %v1627, %v1628
  %v1630 = vrot.slane %v1629, 1
  %v1631 = vadd.f32 %v1629, %v1630
  %s1632 = sld [smem:[#allocation2]]
  %v1633 = vstv %s1632
  %v1634 = vadd.f32 %v1631, %v1633
  %v1635 = vsub.f32 0.0, %v1634
  %v1636 = vmul.f32 %v1635, 1.442695
  %v1637 = vpow.pop %v1636
  %v1638 = vadd.f32 %v1637, 1.0
  %v1639 = vrcp.pop %v1638
  %v1640 = vmul.f32 1.0, %v1639
  %1641 = vst [vmem:[%s5] sm:$0x1] %v1640
  // Predicated region
  $region22: #{fully_connected_classify_net.1} parent=0 // pred_check
    _
  $region23: #{fully_connected_classify_net.1} parent=0 // pred_check_branch
    %1643 = sbr.rel (0) target = $region25
  $region24: #{fully_connected_classify_net.1} parent=0 // pred_region
    _
  $region25: #{fully_connected_classify_net.1} parent=0 // pred_fallthru
    _
  // Predicated region
  $region26: #{fully_connected_classify_net.1} parent=0 // pred_check
    _
  $region27: #{fully_connected_classify_net.1} parent=0 // pred_check_branch
    %1645 = sbr.rel (0) target = $region29
  $region28: #{fully_connected_classify_net.1} parent=0 // pred_region
    _
  $region29: #{fully_connected_classify_net.1} parent=0 // pred_fallthru
    _

</llo_original>
